<compile_context>
chip_gen: v6e
topology: v6e:2x2x1
jax: 0.10.0
libtpu: 0.0.40
codegen_flags: <defaults>
</compile_context>

<pallas_src>
import functools
import math

import jax
import jax.numpy as jnp
from jax import lax
from jax.experimental import pallas as pl
from jax.experimental.pallas import tpu as pltpu


# --------------------------------------------------------------------------- #
# helpers                                                                      #
# --------------------------------------------------------------------------- #
def _vmem_limit(est_bytes):
    """Scoped-VMEM limit from an estimate of the kernel's block working set."""
    return int(min(max(2 * est_bytes + (8 << 20), 32 << 20), 56 << 20))


def _fused_row_tile(H, W, C, budget_bytes=2 << 20):
    """Largest even divisor of H whose (tH, W, C) f32 block fits the budget."""
    cap = max(2, budget_bytes // (W * C * 4))
    t = 2
    for cand in range(2, min(H, cap) + 1, 2):
        if H % cand == 0:
            t = cand
    return t


def _pe_row_tile(H, W, C, budget_bytes=4 << 20):
    if H * W * C * 4 <= budget_bytes:
        return H
    cap = max(8, budget_bytes // (W * C * 4))
    t = None
    for cand in range(8, min(H, cap) + 1, 8):
        if H % cand == 0:
            t = cand
    return t if t is not None else H


# --------------------------------------------------------------------------- #
# Kernel 1: transposed 1x1 conv (NCHW in -> NCHW out) for non-top-down levels  #
#   out(C, tm) = w^T(C, Cin) @ x(Cin, tm); spatial pixels on lanes.            #
# --------------------------------------------------------------------------- #
def _conv1x1_nchw_kernel(x_ref, wt_ref, b_ref, o_ref):
    # x_ref: (1, Cin, tm); wt_ref: (C, Cin); b_ref: (C, 1); o_ref: (1, C, tm)
    acc = jnp.dot(wt_ref[...], x_ref[0], preferred_element_type=jnp.float32)
    o_ref[0] = (acc + b_ref[...]).astype(o_ref.dtype)


def conv1x1_nchw(x_nchw, w, b):
    """1x1 conv (stride 1, pad 0) reading and writing NCHW directly."""
    B, Cin, H, W = x_nchw.shape
    Cout = w.shape[1]
    M = H * W
    x3 = x_nchw.reshape(B, Cin, M)                      # contiguous -> free reshape
    wt = jnp.transpose(w, (1, 0))                       # (Cout, Cin)
    tm = 512 if M >= 512 else M                         # lane-aligned or full extent
    est = 4 * (2 * Cin * tm + 2 * Cout * tm + Cout * Cin + Cout + 4 * Cout * tm)
    out = pl.pallas_call(
        _conv1x1_nchw_kernel,
        out_shape=jax.ShapeDtypeStruct((B, Cout, M), jnp.float32),
        grid=(B, pl.cdiv(M, tm)),                       # tail block masked by Pallas
        in_specs=[
            pl.BlockSpec((1, Cin, tm), lambda bi, j: (bi, 0, j)),
            pl.BlockSpec((Cout, Cin), lambda bi, j: (0, 0)),
            pl.BlockSpec((Cout, 1), lambda bi, j: (0, 0)),
        ],
        out_specs=pl.BlockSpec((1, Cout, tm), lambda bi, j: (bi, 0, j)),
        compiler_params=pltpu.CompilerParams(
            dimension_semantics=("parallel", "parallel"),
            vmem_limit_bytes=_vmem_limit(est)),
    )(x3, wt, b.reshape(Cout, 1))
    return out.reshape(B, Cout, H, W)


# --------------------------------------------------------------------------- #
# Kernel 2: fused top-down level (single pass per (batch, H-tile) block)       #
#   lateral = conv1x1(x); up = bilinear_2x(prev); out = (lateral + up) * s     #
# Bilinear 2x (PyTorch align_corners=False, edge-clamped):                     #
#   out[2k]   = 0.25*in[k-1] + 0.75*in[k]                                      #
#   out[2k+1] = 0.75*in[k]   + 0.25*in[k+1]                                    #
# H interleave = free major-dim merge; W interleave folded into a matmul with  #
# a precomputed interpolation matrix (clamping baked in, no rolls / masks).    #
# --------------------------------------------------------------------------- #
def _fused_topdown_kernel(x_ref, prev_ref, halo_ref, w_ref, b_ref, mw_ref, o_ref,
                          *, scale):
    # x_ref:    (1, tH*W, Cin)   lateral input pixels (row-major NHWC order)
    # prev_ref: (1, tHp, Ws, C)  aligned rows of the coarser fused map (tHp = tH/2)
    # halo_ref: (1, 1, 2, Ws, C) [row above, row below], edge-clamped, for this tile
    # w_ref:    (Cin, C); b_ref: (1, C)
    # mw_ref:   (tH, W, Ws)      bilinear-2x W interpolation matrix (row-batched)
    # o_ref:    (1, tH, W, C)    contiguous NHWC output block
    tH, W, C = o_ref.shape[1], o_ref.shape[2], o_ref.shape[3]
    tHp, Ws = prev_ref.shape[1], prev_ref.shape[2]

    # ---- lateral 1x1 conv on the MXU (C = d_model on lanes -> lane-dense) ----
    lat = jnp.dot(x_ref[0], w_ref[...], preferred_element_type=jnp.float32)
    lat = (lat + b_ref[...]).reshape(tH, W, C)

    # ---- bilinear 2x along H (rows on a major axis: slices / concats only) ----
    p = prev_ref[...].reshape(tHp, Ws, C).astype(jnp.float32)
    halo = halo_ref[...].reshape(2, Ws, C).astype(jnp.float32)
    top, bot = halo[0:1], halo[1:2]
    if tHp > 1:
        p_up = jnp.concatenate([top, p[:-1]], axis=0)    # row k-1 (edge-clamped)
        p_dn = jnp.concatenate([p[1:], bot], axis=0)     # row k+1 (edge-clamped)
    else:
        p_up, p_dn = top, bot
    even_h = 0.25 * p_up + 0.75 * p
    odd_h = 0.75 * p + 0.25 * p_dn
    up_h = jnp.concatenate([even_h[:, None], odd_h[:, None]], axis=1)
    up_h = up_h.reshape(tH, Ws, C)                       # free major-dim merge

    # ---- bilinear 2x along W as a row-batched matmul (MXU; clamping in mw) ----
    up = lax.dot_general(mw_ref[...], up_h,
                         dimension_numbers=(((2,), (1,)), ((0,), (0,))),
                         preferred_element_type=jnp.float32)   # (tH, W, C)

    acc = lat + up
    if scale != 1.0:                                     # trace-time skip for 'sum'
        acc = acc * scale
    o_ref[...] = acc[None].astype(o_ref.dtype)


def fused_topdown_level(x_nchw, prev_nhwc, w, b, scale):
    """lateral 1x1 conv + bilinear-2x top-down add for one FPN level.

    x_nchw: (B, Cin, H, W); prev_nhwc: (B, H/2, W/2, C).  Returns NHWC (B, H, W, C).
    """
    B, Cin, H, W = x_nchw.shape
    Bp, Hp, Ws, C = prev_nhwc.shape
    assert B == Bp and H == 2 * Hp and W == 2 * Ws, "FPN levels must halve spatially"

    tH = _fused_row_tile(H, W, C)
    if (tH * W) % 8 != 0:       # keep tiled block rows sublane-aligned, else one tile
        tH = H
    nT = H // tH
    tHp = tH // 2

    # Inherent input-boundary transpose (module interface is NCHW); flattened so the
    # kernel only squeezes the leading dim.
    x_flat = jnp.transpose(x_nchw, (0, 2, 3, 1)).reshape(B, H * W, Cin)

    # Two edge-clamped halo rows of prev per H-tile (tiny XLA gather).
    tiles = jnp.arange(nT)
    idx_top = jnp.maximum(tiles * tHp - 1, 0)
    idx_bot = jnp.minimum((tiles + 1) * tHp, Hp - 1)
    halo = jnp.stack([jnp.take(prev_nhwc, idx_top, axis=1),
                      jnp.take(prev_nhwc, idx_bot, axis=1)], axis=2)  # (B,nT,2,Ws,C)

    # Bilinear-2x (align_corners=False) W interpolation matrix, edge-clamped.
    wout = jnp.arange(W)
    u_near = wout // 2
    u_far = jnp.where(wout % 2 == 1,
                      jnp.minimum(u_near + 1, Ws - 1),
                      jnp.maximum(u_near - 1, 0))
    mw = (0.75 * jax.nn.one_hot(u_near, Ws, dtype=jnp.float32)
          + 0.25 * jax.nn.one_hot(u_far, Ws, dtype=jnp.float32))      # (W, Ws)
    mwb = jnp.broadcast_to(mw[None], (tH, W, Ws))

    cin_pad = ((Cin + 127) // 128) * 128
    est = 4 * (2 * tH * W * cin_pad + 2 * tHp * Ws * C + 4 * Ws * C
               + 2 * tH * W * Ws + Cin * C + C
               + 2 * tH * W * C + 8 * tH * W * C)
    return pl.pallas_call(
        functools.partial(_fused_topdown_kernel, scale=scale),
        out_shape=jax.ShapeDtypeStruct((B, H, W, C), jnp.float32),
        grid=(B, nT),
        in_specs=[
            pl.BlockSpec((1, tH * W, Cin), lambda bi, i: (bi, i, 0)),
            pl.BlockSpec((1, tHp, Ws, C), lambda bi, i: (bi, i, 0, 0)),
            pl.BlockSpec((1, 1, 2, Ws, C), lambda bi, i: (bi, i, 0, 0, 0)),
            pl.BlockSpec((Cin, C), lambda bi, i: (0, 0)),
            pl.BlockSpec((1, C), lambda bi, i: (0, 0)),
            pl.BlockSpec((tH, W, Ws), lambda bi, i: (0, 0, 0)),
        ],
        out_specs=pl.BlockSpec((1, tH, W, C), lambda bi, i: (bi, i, 0, 0)),
        compiler_params=pltpu.CompilerParams(
            dimension_semantics=("parallel", "parallel"),
            vmem_limit_bytes=_vmem_limit(est)),
    )(x_flat, prev_nhwc, halo, w, b.reshape(1, C), mwb)


# --------------------------------------------------------------------------- #
# Kernel 3: sine position embedding (PositionEmbeddingSine semantics)          #
#   pos[c, y, x] = sin(ytab[c, y] + xtab[c, x]);  cos(t) == sin(t + pi/2)      #
#   -> exactly one transcendental per element, written directly in (C, H, W).  #
# --------------------------------------------------------------------------- #
def _sine_pe_kernel(y_ref, x_ref, o_ref):
    # y_ref: (C, tH, 1), x_ref: (C, 1, W), o_ref: (C, tH, W)  (W on lanes)
    o_ref[...] = jnp.sin(y_ref[...] + x_ref[...])


def position_encoding_sine(H, W, d_model, temperature=10000.0):
    """(1, d_model, H, W) f32 sine position embedding (NCHW, batch-broadcastable)."""
    assert d_model % 4 == 0, "d_model must be divisible by 4"
    npf = d_model // 2
    scale = 2.0 * math.pi
    eps = 1e-6
    j = jnp.arange(npf, dtype=jnp.float32)
    inv_dt_half = temperature ** (-2.0 * jnp.floor(j / 2.0) / npf)
    inv_dt = jnp.concatenate([inv_dt_half, inv_dt_half])                 # (C,)
    is_y = jnp.concatenate([jnp.ones((npf,), jnp.float32),
                            jnp.zeros((npf,), jnp.float32)])             # (C,)
    phase = (jnp.arange(d_model) % 2).astype(jnp.float32) * (0.5 * math.pi)
    y_n = (jnp.arange(H, dtype=jnp.float32) + 1.0) * (scale / (H + eps))
    x_n = (jnp.arange(W, dtype=jnp.float32) + 1.0) * (scale / (W + eps))

    ytab = ((inv_dt * is_y)[:, None] * y_n[None, :]).reshape(d_model, H, 1)
    xtab = ((inv_dt * (1.0 - is_y))[:, None] * x_n[None, :]
            + phase[:, None]).reshape(d_model, 1, W)

    tH = _pe_row_tile(H, W, d_model)
    est = 4 * 3 * d_model * tH * W
    pos = pl.pallas_call(
        _sine_pe_kernel,
        out_shape=jax.ShapeDtypeStruct((d_model, H, W), jnp.float32),
        grid=(H // tH,),
        in_specs=[
            pl.BlockSpec((d_model, tH, 1), lambda i: (0, i, 0)),
            pl.BlockSpec((d_model, 1, W), lambda i: (0, 0, 0)),
        ],
        out_specs=pl.BlockSpec((d_model, tH, W), lambda i: (0, i, 0)),
        compiler_params=pltpu.CompilerParams(
            dimension_semantics=("parallel",),
            vmem_limit_bytes=_vmem_limit(est)),
    )(ytab, xtab)
    return pos[None]   # (1, d_model, H, W)


# --------------------------------------------------------------------------- #
# FpnNeck                                                                      #
# --------------------------------------------------------------------------- #
class FpnNeckPallas:
    """Pallas implementation of SAM2's FpnNeck forward (kernel_size=1, stride=1,
    padding=0, fpn_interp_model='bilinear').  Inputs/outputs are NCHW."""

    def __init__(self, d_model, backbone_channel_list, fuse_type="sum",
                 fpn_top_down_levels=None, key=jax.random.PRNGKey(0)):
        assert fuse_type in ("sum", "avg")
        self.d_model = d_model
        self.backbone_channel_list = list(backbone_channel_list)
        self.fuse_type = fuse_type
        n_levels = len(self.backbone_channel_list)
        if fpn_top_down_levels is None:
            fpn_top_down_levels = range(n_levels)
        self.fpn_top_down_levels = list(fpn_top_down_levels)
        self._pe_cache = {}   # (H, W) -> (1, d_model, H, W) position encoding

        # Deterministic 1x1 conv params (PyTorch-style uniform(-1/sqrt(fan_in), ..)).
        self.weights, self.biases = [], []
        for cin in self.backbone_channel_list:
            key, wk, bk = jax.random.split(key, 3)
            bound = 1.0 / math.sqrt(cin)
            self.weights.append(
                jax.random.uniform(wk, (cin, d_model), jnp.float32, -bound, bound))
            self.biases.append(
                jax.random.uniform(bk, (d_model,), jnp.float32, -bound, bound))

    def _pos(self, H, W):
        if (H, W) not in self._pe_cache:
            self._pe_cache[(H, W)] = position_encoding_sine(H, W, self.d_model)
        # Batch dim 1 (values are batch-independent); not materialized per batch.
        return self._pe_cache[(H, W)]

    def __call__(self, xs):
        # xs: list of NCHW tensors; xs[i] has backbone_channel_list[n-i] channels,
        # xs[0] is the highest resolution, each next level is 2x smaller spatially.
        n = len(self.weights) - 1
        assert len(xs) == len(self.weights)
        out = [None] * len(xs)
        pos = [None] * len(xs)
        prev_nhwc = None
        scale = 0.5 if self.fuse_type == "avg" else 1.0
        for i in range(n, -1, -1):
            x = xs[i].astype(jnp.float32)                       # NCHW
            B, _, H, W = x.shape
            w, bb = self.weights[n - i], self.biases[n - i]
            if i in self.fpn_top_down_levels and prev_nhwc is not None:
                out_nhwc = fused_topdown_level(x, prev_nhwc, w, bb, scale)
                out[i] = jnp.transpose(out_nhwc, (0, 3, 1, 2))  # boundary transpose
                prev_nhwc = out_nhwc                            # reused as-is (free)
            else:
                out[i] = conv1x1_nchw(x, w, bb)                 # NCHW in -> NCHW out
                need_prev = (i - 1 >= 0) and ((i - 1) in self.fpn_top_down_levels)
                prev_nhwc = (jnp.transpose(out[i], (0, 2, 3, 1))
                             if need_prev else None)
            pos[i] = self._pos(H, W)
        return out, pos


if __name__ == "__main__":
    key = jax.random.PRNGKey(0)
    B = 2
    d_model = 128
    backbone_channel_list = [32, 16, 8]  # coarsest level first (most channels)
    # xs[i] channels = backbone_channel_list[n-i]; spatial halves each level.
    shapes = [(B, 8, 32, 32), (B, 16, 16, 16), (B, 32, 8, 8)]

    keys = jax.random.split(key, len(shapes) + 1)
    xs = [jax.random.normal(keys[k + 1], s, jnp.float32) for k, s in enumerate(shapes)]

    neck = FpnNeckPallas(d_model, backbone_channel_list, key=keys[0])
    out, pos = neck(xs)
    for o, p in zip(out, pos):
        jax.block_until_ready(o)
        jax.block_until_ready(p)
    print("KERNEL_OK")
</pallas_src>

<mosaic_0001>
module attributes {stable_mosaic.version = 11 : i64} {
  func.func @_conv1x1_nchw_kernel(%arg0: i32, %arg1: i32, %arg2: memref<1x32x64xf32, #tpu.memory_space<vmem>>, %arg3: memref<128x32xf32, #tpu.memory_space<vmem>>, %arg4: memref<128x1xf32, #tpu.memory_space<vmem>>, %arg5: memref<1x128x64xf32, #tpu.memory_space<vmem>>) attributes {dimension_semantics = [#tpu.dimension_semantics<parallel>, #tpu.dimension_semantics<parallel>], iteration_bounds = array<i64: 2, 1>, scalar_prefetch = 0 : i64, scratch_operands = 0 : i64, tpu.core_type = #tpu.core_type<tc>, window_params = [{transform_indices = @transform_0, window_bounds = array<i64: 1, 32, 64>}, {pipeline_mode = #tpu.pipeline_mode<synchronous>, transform_indices = @transform_1, window_bounds = array<i64: 128, 32>}, {pipeline_mode = #tpu.pipeline_mode<synchronous>, transform_indices = @transform_2, window_bounds = array<i64: 128, 1>}, {transform_indices = @transform_3, window_bounds = array<i64: 1, 128, 64>}]} {
    %c0 = arith.constant 0 : index
    %c0_0 = arith.constant 0 : index
    %0 = vector.load %arg3[%c0, %c0_0] : memref<128x32xf32, #tpu.memory_space<vmem>>, vector<128x32xf32>
    %c0_1 = arith.constant 0 : index
    %c0_2 = arith.constant 0 : index
    %c0_3 = arith.constant 0 : index
    %1 = vector.load %arg2[%c0_1, %c0_2, %c0_3] : memref<1x32x64xf32, #tpu.memory_space<vmem>>, vector<1x32x64xf32>
    %2 = vector.shape_cast %1 : vector<1x32x64xf32> to vector<32x64xf32>
    %cst = arith.constant dense<0.000000e+00> : vector<128x64xf32>
    %3 = tpu.matmul %0, %2, %cst {dimension_numbers = #tpu.dot_dimension_numbers<[1], [0], [0], [1], [0, 0, 1, 1], [], []>} : vector<128x32xf32>, vector<32x64xf32>, vector<128x64xf32> -> vector<128x64xf32>
    %c0_4 = arith.constant 0 : index
    %c0_5 = arith.constant 0 : index
    %4 = vector.load %arg4[%c0_4, %c0_5] : memref<128x1xf32, #tpu.memory_space<vmem>>, vector<128x1xf32>
    %5 = vector.broadcast %4 : vector<128x1xf32> to vector<128x64xf32>
    %6 = arith.addf %3, %5 : vector<128x64xf32>
    %c0_6 = arith.constant 0 : index
    %c0_7 = arith.constant 0 : index
    %c0_8 = arith.constant 0 : index
    %7 = vector.load %arg5[%c0_6, %c0_7, %c0_8] : memref<1x128x64xf32, #tpu.memory_space<vmem>>, vector<1x128x64xf32>
    %8 = vector.shape_cast %7 : vector<1x128x64xf32> to vector<128x64xf32>
    %9 = vector.shape_cast %6 : vector<128x64xf32> to vector<1x128x64xf32>
    tpu.vector_store %arg5[%c0_6, %c0_7, %c0_8], %9 {strides = array<i32>} : memref<1x128x64xf32, #tpu.memory_space<vmem>>, vector<1x128x64xf32>,
    return
  }
  func.func @transform_0(%arg0: i32, %arg1: i32) -> (i32, i32, i32) {
    %c0_i32 = arith.constant 0 : i32
    %c0_i32_0 = arith.constant 0 : i32
    return %arg0, %c0_i32, %arg1 : i32, i32, i32
  }
  func.func @transform_1(%arg0: i32, %arg1: i32) -> (i32, i32) {
    %c0_i32 = arith.constant 0 : i32
    %c0_i32_0 = arith.constant 0 : i32
    %c0_i32_1 = arith.constant 0 : i32
    return %c0_i32, %c0_i32_0 : i32, i32
  }
  func.func @transform_2(%arg0: i32, %arg1: i32) -> (i32, i32) {
    %c0_i32 = arith.constant 0 : i32
    %c0_i32_0 = arith.constant 0 : i32
    %c0_i32_1 = arith.constant 0 : i32
    return %c0_i32, %c0_i32_0 : i32, i32
  }
  func.func @transform_3(%arg0: i32, %arg1: i32) -> (i32, i32, i32) {
    %c0_i32 = arith.constant 0 : i32
    %c0_i32_0 = arith.constant 0 : i32
    return %arg0, %c0_i32, %arg1 : i32, i32, i32
  }
}

</mosaic_0001>

<llo_original>
// kernel: tpu_custom_call.1
$region0: #{tpu_custom_call.1}
  #allocation0 [shape = 'u32[]', space=smem, size = 0x4, offset = 0x4, fixed_abs, tag = 'smem constant byte address 0x4 - core index']
  #allocation1 [shape = 'u32[144,128]{1,0:T(1,128)}', space=vmem, size = 0x12000, scoped, tag = 'internal scratch']
  %s0 = inlined_call_operand.vmem [shape: f32[2,32,64], index: 0, kind: input, shape index: {}]
  %s1 = inlined_call_operand.vmem [shape: f32[128,32], index: 1, kind: input, shape index: {}]
  %s2 = inlined_call_operand.vmem [shape: f32[128,1], index: 2, kind: input, shape index: {}]
  %s3 = inlined_call_operand.vmem [shape: f32[2,128,64], index: 3, kind: output, shape index: {}]
  %s4 = sld [smem:[#allocation0]]
  $region45: #{tpu_custom_call.1} parent=0
    _
  %s6 = ssub.s32 1, %s4
  %s7 = scalar_select 0, %s6, %s4
  loop: start=0, step=1, limit=4
  $region2: #{tpu_custom_call.1} parent=0 // loop_pre_header
    _
  $region3: #{tpu_custom_call.1} parent=0 // loop_header
    %s9 = sphi 0, %s13
    %p10 = scmp.ge.s32.totalorder %s9, 4
    %s16 = sphi 0, %s28
    %s17 = sphi 0, %s24
    %s18 = sphi 0, %s16
    %s19 = sphi 0, %s17
    %s20 = sphi 0, %s18
    %s21 = sphi 0, %s19
    %s33 = sphi 0, %s35
    %s36 = sphi 0, %s33
    %s37 = sphi 0, %s36
    %s53 = sphi 0, %s37
    %s57 = sphi 0, %s57
    %s59 = sphi 0, %s57
    %s60 = sphi 0, %s59
    %s74 = sphi 0, %s60
    %s78 = sphi 0, %s78
    %s80 = sphi 0, %s78
    %s81 = sphi 0, %s80
    %s95 = sphi 0, %s81
    %s103 = sphi 0, %s105
    %s106 = sphi 0, %s103
    %s107 = sphi 0, %s106
    %s123 = sphi 0, %s107
  $region4: #{tpu_custom_call.1} parent=0 // loop_header_branch
    %12 = sbr.rel (%p10) target = $region8
  $region5: #{tpu_custom_call.1} parent=0 // loop_body
    %s14 = ssub.s32 %s9, 1
    %s15 = ssub.s32 %s9, 2
    %s22 = sadd.s32 1, %s17
    %p23 = scmp.ge.s32.totalorder %s22, 1
    %s24 = scalar_select %p23, 0, %s22
    %s25 = sadd.s32 1, %s16
    %s26 = scalar_select %p23, %s25, %s16
    %p27 = scmp.ge.s32.totalorder %s26, 2
    %s28 = scalar_select %p27, 0, %s26
    %s29 = ssub.s32 %s16, %s28
    %s30 = ssub.s32 %s17, %s24
    %s31 = sor.u32 %s29, %s30
    %p32 = scmp.eq.s32.totalorder %s31, 0
    %s34 = sadd.s32 %s33, 1
    %s35 = scalar_select %p32, %s33, %s34
    %p38 = pneg %p32
    %p39 = scmp.eq.s32.totalorder %s9, 1
    %p40 = por %p38, %p39
    %p41 = scmp.ne.s32.totalorder %s33, %s36
    %p42 = scmp.eq.s32.totalorder %s9, 0
    %p43 = por %p41, %p42
    %p44 = scmp.ne.s32.totalorder %s33, %s36
    %p45 = scmp.eq.s32.totalorder %s14, 1
    %p46 = por %p44, %p45
    %p47 = scmp.ne.s32.totalorder %s36, %s37
    %p48 = scmp.eq.s32.totalorder %s14, 0
    %p49 = por %p47, %p48
    %p50 = scmp.ne.s32.totalorder %s36, %s37
    %p51 = scmp.eq.s32.totalorder %s15, 1
    %p52 = por %p50, %p51
    %p54 = scmp.ne.s32.totalorder %s37, %s53
    %p55 = scmp.eq.s32.totalorder %s15, 0
    %p56 = por %p54, %p55
    %s58 = sadd.s32 %s57, 1
    %p61 = scmp.eq.s32.totalorder %s9, 1
    %p62 = scmp.ne.s32.totalorder %s57, %s59
    %p63 = scmp.eq.s32.totalorder %s9, 0
    %p64 = por %p62, %p63
    %p65 = scmp.ne.s32.totalorder %s57, %s59
    %p66 = scmp.eq.s32.totalorder %s14, 1
    %p67 = por %p65, %p66
    %p68 = scmp.ne.s32.totalorder %s59, %s60
    %p69 = scmp.eq.s32.totalorder %s14, 0
    %p70 = por %p68, %p69
    %p71 = scmp.ne.s32.totalorder %s59, %s60
    %p72 = scmp.eq.s32.totalorder %s15, 1
    %p73 = por %p71, %p72
    %p75 = scmp.ne.s32.totalorder %s60, %s74
    %p76 = scmp.eq.s32.totalorder %s15, 0
    %p77 = por %p75, %p76
    %s79 = sadd.s32 %s78, 1
    %p82 = scmp.eq.s32.totalorder %s9, 1
    %p83 = scmp.ne.s32.totalorder %s78, %s80
    %p84 = scmp.eq.s32.totalorder %s9, 0
    %p85 = por %p83, %p84
    %p86 = scmp.ne.s32.totalorder %s78, %s80
    %p87 = scmp.eq.s32.totalorder %s14, 1
    %p88 = por %p86, %p87
    %p89 = scmp.ne.s32.totalorder %s80, %s81
    %p90 = scmp.eq.s32.totalorder %s14, 0
    %p91 = por %p89, %p90
    %p92 = scmp.ne.s32.totalorder %s80, %s81
    %p93 = scmp.eq.s32.totalorder %s15, 1
    %p94 = por %p92, %p93
    %p96 = scmp.ne.s32.totalorder %s81, %s95
    %p97 = scmp.eq.s32.totalorder %s15, 0
    %p98 = por %p96, %p97
    %s99 = ssub.s32 %s16, %s28
    %s100 = ssub.s32 %s17, %s24
    %s101 = sor.u32 %s99, %s100
    %p102 = scmp.eq.s32.totalorder %s101, 0
    %s104 = sadd.s32 %s103, 1
    %s105 = scalar_select %p102, %s103, %s104
    %p108 = pneg %p102
    %p109 = scmp.eq.s32.totalorder %s9, 1
    %p110 = por %p108, %p109
    %p111 = scmp.ne.s32.totalorder %s103, %s106
    %p112 = scmp.eq.s32.totalorder %s9, 0
    %p113 = por %p111, %p112
    %p114 = scmp.ne.s32.totalorder %s103, %s106
    %p115 = scmp.eq.s32.totalorder %s14, 1
    %p116 = por %p114, %p115
    %p117 = scmp.ne.s32.totalorder %s106, %s107
    %p118 = scmp.eq.s32.totalorder %s14, 0
    %p119 = por %p117, %p118
    %p120 = scmp.ne.s32.totalorder %s106, %s107
    %p121 = scmp.eq.s32.totalorder %s15, 1
    %p122 = por %p120, %p121
    %p124 = scmp.ne.s32.totalorder %s107, %s123
    %p125 = scmp.eq.s32.totalorder %s15, 0
    %p126 = por %p124, %p125
    %p127 = scmp.le.s32.totalorder 1, %s9
    %p128 = scmp.lt.s32.totalorder %s9, 3
    %p129 = pnand %p127, %p128
    %p130 = pneg %p129
    // Predicated region
    $region9: #{tpu_custom_call.1} parent=5 // pred_check
      _
    $region10: #{tpu_custom_call.1} parent=5 // pred_check_branch
      %132 = sbr.rel (%p129) target = $region12
    $region11: #{tpu_custom_call.1} parent=5 // pred_region
      %s133 = ssub.s32 %s9, 1
      // Predicated region
      $region13: #{tpu_custom_call.1} parent=11 // pred_check
        %p134 = pneg %p70
      $region14: #{tpu_custom_call.1} parent=11 // pred_check_branch
        %136 = sbr.rel (%p134) target = $region16
      $region15: #{tpu_custom_call.1} parent=11 // pred_region
        _
      $region16: #{tpu_custom_call.1} parent=11 // pred_fallthru
        _
      // Predicated region
      $region17: #{tpu_custom_call.1} parent=11 // pred_check
        %p137 = pneg %p91
      $region18: #{tpu_custom_call.1} parent=11 // pred_check_branch
        %139 = sbr.rel (%p137) target = $region20
      $region19: #{tpu_custom_call.1} parent=11 // pred_region
        _
      $region20: #{tpu_custom_call.1} parent=11 // pred_fallthru
        _
    $region12: #{tpu_custom_call.1} parent=5 // pred_fallthru
      _
    %p140 = scmp.lt.s32.totalorder %s9, 2
    // Predicated region
    $region21: #{tpu_custom_call.1} parent=5 // pred_check
      %p141 = pneg %p140
    $region22: #{tpu_custom_call.1} parent=5 // pred_check_branch
      %143 = sbr.rel (%p141) target = $region24
    $region23: #{tpu_custom_call.1} parent=5 // pred_region
      // Predicated region
      $region25: #{tpu_custom_call.1} parent=23 // pred_check
        %p144 = pneg %p43
      $region26: #{tpu_custom_call.1} parent=23 // pred_check_branch
        %146 = sbr.rel (%p144) target = $region28
      $region27: #{tpu_custom_call.1} parent=23 // pred_region
        %p147 = scmp.lt.s32.totalorder %s16, 1
        %s148 = scalar_select %p147, %s16, 1
        %p149 = scmp.lt.s32.totalorder %s17, 0
        %s150 = scalar_select %p149, %s17, 0
        %s151 = smul.addr %s148, 4
        %s152 = sadd.s32 %s150, %s151
        %s153 = smul.addr %s152, 8
        %s154 = scalar_lea.vmem %s0, %s153
      $region28: #{tpu_custom_call.1} parent=23 // pred_fallthru
        _
    $region24: #{tpu_custom_call.1} parent=5 // pred_fallthru
      _
    %p155 = scmp.le.s32.totalorder 1, %s9
    %p156 = scmp.lt.s32.totalorder %s9, 3
    %p157 = pnand %p155, %p156
    %p158 = pneg %p157
    // Predicated region
    $region29: #{tpu_custom_call.1} parent=5 // pred_check
      _
    $region30: #{tpu_custom_call.1} parent=5 // pred_check_branch
      %160 = sbr.rel (%p157) target = $region32
    $region31: #{tpu_custom_call.1} parent=5 // pred_region
      %s161 = ssub.s32 %s9, 1
      %p162 = scmp.lt.s32.totalorder %s18, 1
      %s163 = scalar_select %p162, %s18, 1
      %p164 = scmp.lt.s32.totalorder %s19, 0
      %s165 = scalar_select %p164, %s19, 0
      %s166 = smul.addr %s163, 4
      %s167 = sadd.s32 %s165, %s166
      %s168 = smul.addr %s167, 8
      %s169 = scalar_lea.vmem %s0, %s168
      %p170 = pneg %p49
      %p171 = pneg %p46
      %p172 = pneg %p70
      %p173 = pneg %p67
      %p174 = pneg %p91
      %p175 = pneg %p88
      %p176 = pneg %p119
      %p177 = pneg %p116
      %p178 = scmp.lt.s32.totalorder %s18, 1
      %s179 = scalar_select %p178, %s18, 1
      %p180 = scmp.lt.s32.totalorder %s19, 0
      %s181 = scalar_select %p180, %s19, 0
      %s182 = smul.addr %s179, 16
      %s183 = sadd.s32 %s181, %s182
      %s184 = smul.addr %s183, 8
      %s185 = scalar_lea.vmem %s3, %s184
      %p186 = scmp.lt.s32.totalorder %s18, 1
      %s187 = scalar_select %p186, %s18, 1
      %p188 = scmp.lt.s32.totalorder %s19, 0
      %s189 = scalar_select %p188, %s19, 0
      %s190 = smul.addr %s187, 4
      %s191 = sadd.s32 %s189, %s190
      %s192 = smul.addr %s191, 8
      %s193 = scalar_lea.vmem %s0, %s192
      %p194 = scmp.lt.s32.totalorder %s18, 1
      %s195 = scalar_select %p194, %s18, 1
      %p196 = scmp.lt.s32.totalorder %s19, 0
      %s197 = scalar_select %p196, %s19, 0
      %s198 = smul.addr %s195, 16
      %s199 = sadd.s32 %s197, %s198
      %s200 = smul.addr %s199, 8
      %s201 = scalar_lea.vmem %s3, %s200
      %v202 = vld [vmem:[%s1] sm:$0xff]
      %v203 = vld [vmem:[%s1 + $0x8] sm:$0xff]
      %v204 = vld [vmem:[%s1 + $0x10] sm:$0xff]
      %v205 = vld [vmem:[%s1 + $0x18] sm:$0xff]
      %v206 = vld [vmem:[%s1 + $0x20] sm:$0xff]
      %v207 = vld [vmem:[%s1 + $0x28] sm:$0xff]
      %v208 = vld [vmem:[%s1 + $0x30] sm:$0xff]
      %v209 = vld [vmem:[%s1 + $0x38] sm:$0xff]
      %v210 = vld [vmem:[%s1 + $0x40] sm:$0xff]
      %v211 = vld [vmem:[%s1 + $0x48] sm:$0xff]
      %v212 = vld [vmem:[%s1 + $0x50] sm:$0xff]
      %v213 = vld [vmem:[%s1 + $0x58] sm:$0xff]
      %v214 = vld [vmem:[%s1 + $0x60] sm:$0xff]
      %v215 = vld [vmem:[%s1 + $0x68] sm:$0xff]
      %v216 = vld [vmem:[%s1 + $0x70] sm:$0xff]
      %v217 = vld [vmem:[%s1 + $0x78] sm:$0xff]
      %v218 = vld [vmem:[%s193] sm:$0xff]
      %v219 = vld [vmem:[%s193 + $0x8] sm:$0xff]
      %v220 = vld [vmem:[%s193 + $0x10] sm:$0xff]
      %v221 = vld [vmem:[%s193 + $0x18] sm:$0xff]
      %v222 = vld [vmem:[%s2] sm:$0xff]
      %v223 = vld [vmem:[%s2 + $0x8] sm:$0xff]
      %v224 = vld [vmem:[%s2 + $0x10] sm:$0xff]
      %v225 = vld [vmem:[%s2 + $0x18] sm:$0xff]
      %v226 = vld [vmem:[%s2 + $0x20] sm:$0xff]
      %v227 = vld [vmem:[%s2 + $0x28] sm:$0xff]
      %v228 = vld [vmem:[%s2 + $0x30] sm:$0xff]
      %v229 = vld [vmem:[%s2 + $0x38] sm:$0xff]
      %v230 = vld [vmem:[%s2 + $0x40] sm:$0xff]
      %v231 = vld [vmem:[%s2 + $0x48] sm:$0xff]
      %v232 = vld [vmem:[%s2 + $0x50] sm:$0xff]
      %v233 = vld [vmem:[%s2 + $0x58] sm:$0xff]
      %v234 = vld [vmem:[%s2 + $0x60] sm:$0xff]
      %v235 = vld [vmem:[%s2 + $0x68] sm:$0xff]
      %v236 = vld [vmem:[%s2 + $0x70] sm:$0xff]
      %v237 = vld [vmem:[%s2 + $0x78] sm:$0xff]
      %239 = vset.pattern.permute.xlu0 0
      %240 = vperm.xlu0 %239, %v222
      %v241 = vpop.permute.xlu0 %240
      %244 = vset.pattern.permute.xlu0 0
      %245 = vperm.xlu0 %244, %v223
      %v246 = vpop.permute.xlu0 %245
      %249 = vset.pattern.permute.xlu0 0
      %250 = vperm.xlu0 %249, %v224
      %v251 = vpop.permute.xlu0 %250
      %254 = vset.pattern.permute.xlu0 0
      %255 = vperm.xlu0 %254, %v225
      %v256 = vpop.permute.xlu0 %255
      %259 = vset.pattern.permute.xlu0 0
      %260 = vperm.xlu0 %259, %v226
      %v261 = vpop.permute.xlu0 %260
      %264 = vset.pattern.permute.xlu0 0
      %265 = vperm.xlu0 %264, %v227
      %v266 = vpop.permute.xlu0 %265
      %269 = vset.pattern.permute.xlu0 0
      %270 = vperm.xlu0 %269, %v228
      %v271 = vpop.permute.xlu0 %270
      %274 = vset.pattern.permute.xlu0 0
      %275 = vperm.xlu0 %274, %v229
      %v276 = vpop.permute.xlu0 %275
      %279 = vset.pattern.permute.xlu0 0
      %280 = vperm.xlu0 %279, %v230
      %v281 = vpop.permute.xlu0 %280
      %284 = vset.pattern.permute.xlu0 0
      %285 = vperm.xlu0 %284, %v231
      %v286 = vpop.permute.xlu0 %285
      %289 = vset.pattern.permute.xlu0 0
      %290 = vperm.xlu0 %289, %v232
      %v291 = vpop.permute.xlu0 %290
      %294 = vset.pattern.permute.xlu0 0
      %295 = vperm.xlu0 %294, %v233
      %v296 = vpop.permute.xlu0 %295
      %299 = vset.pattern.permute.xlu0 0
      %300 = vperm.xlu0 %299, %v234
      %v301 = vpop.permute.xlu0 %300
      %304 = vset.pattern.permute.xlu0 0
      %305 = vperm.xlu0 %304, %v235
      %v306 = vpop.permute.xlu0 %305
      %309 = vset.pattern.permute.xlu0 0
      %310 = vperm.xlu0 %309, %v236
      %v311 = vpop.permute.xlu0 %310
      %314 = vset.pattern.permute.xlu0 0
      %315 = vperm.xlu0 %314, %v237
      %v316 = vpop.permute.xlu0 %315
      %vm318 = vcmask 261120
      %v320 = vsel %vm318, %v202, 0
      %v323 = vsel %vm318, %v203, 0
      %v326 = vsel %vm318, %v204, 0
      %v329 = vsel %vm318, %v205, 0
      %v332 = vsel %vm318, %v206, 0
      %v335 = vsel %vm318, %v207, 0
      %v338 = vsel %vm318, %v208, 0
      %v341 = vsel %vm318, %v209, 0
      %v344 = vsel %vm318, %v210, 0
      %v347 = vsel %vm318, %v211, 0
      %v350 = vsel %vm318, %v212, 0
      %v353 = vsel %vm318, %v213, 0
      %v356 = vsel %vm318, %v214, 0
      %v359 = vsel %vm318, %v215, 0
      %v362 = vsel %vm318, %v216, 0
      %v365 = vsel %vm318, %v217, 0
      %367 = vmatprep.subr.mxu0 0.0
      %368 = vmatpush1.msra.mxu0 0.0
      %369 = vmatprep.subr.mxu0 0.0
      %370 = vmatpush1.msra.mxu0 0.0
      %371 = vmatprep.subr.mxu0 0.0
      %372 = vmatpush1.msra.mxu0 0.0
      %373 = vmatprep.subr.mxu0 0.0
      %374 = vmatpush1.msra.mxu0 0.0
      %375 = vmatprep.subr.mxu0 0.0
      %376 = vmatpush1.msra.mxu0 0.0
      %377 = vmatprep.subr.mxu0 0.0
      %378 = vmatpush1.msra.mxu0 0.0
      %379 = vmatprep.subr.mxu0 0.0
      %380 = vmatpush1.msra.mxu0 0.0
      %381 = vmatprep.subr.mxu0 0.0
      %382 = vmatpush1.msra.mxu0 0.0
      %383 = vmatprep.subr.mxu0 0.0
      %384 = vmatpush1.msra.mxu0 0.0
      %385 = vmatprep.subr.mxu0 0.0
      %386 = vmatpush1.msra.mxu0 0.0
      %387 = vmatprep.subr.mxu0 0.0
      %388 = vmatpush1.msra.mxu0 0.0
      %389 = vmatprep.subr.mxu0 0.0
      %390 = vmatpush1.msra.mxu0 0.0
      %391 = vmatprep.subr.mxu0 0.0
      %392 = vmatpush1.msra.mxu0 %v221
      %393 = vmatprep.subr.mxu0 0.0
      %394 = vmatpush1.msra.mxu0 %v220
      %395 = vmatprep.subr.mxu0 0.0
      %396 = vmatpush1.msra.mxu0 %v219
      %397 = vmatprep.subr.mxu0 0.0
      %398 = vmatpush1.msra.mxu0 %v218
      %399 = vmatprep.subr.mxu0 0.0
      %400 = vmatpush2.msra.mxu0 0.0
      %401 = vmatprep.subr.mxu0 0.0
      %402 = vmatpush2.msra.mxu0 0.0
      %403 = vmatprep.subr.mxu0 0.0
      %404 = vmatpush2.msra.mxu0 0.0
      %405 = vmatprep.subr.mxu0 0.0
      %406 = vmatpush2.msra.mxu0 0.0
      %407 = vmatprep.subr.mxu0 0.0
      %408 = vmatpush2.msra.mxu0 0.0
      %409 = vmatprep.subr.mxu0 0.0
      %410 = vmatpush2.msra.mxu0 0.0
      %411 = vmatprep.subr.mxu0 0.0
      %412 = vmatpush2.msra.mxu0 0.0
      %413 = vmatprep.subr.mxu0 0.0
      %414 = vmatpush2.msra.mxu0 0.0
      %415 = vmatprep.subr.mxu0 0.0
      %416 = vmatpush2.msra.mxu0 0.0
      %417 = vmatprep.subr.mxu0 0.0
      %418 = vmatpush2.msra.mxu0 0.0
      %419 = vmatprep.subr.mxu0 0.0
      %420 = vmatpush2.msra.mxu0 0.0
      %421 = vmatprep.subr.mxu0 0.0
      %422 = vmatpush2.msra.mxu0 0.0
      %423 = vmatprep.subr.mxu0 0.0
      %424 = vmatpush2.msra.mxu0 0.0
      %425 = vmatprep.subr.mxu0 0.0
      %426 = vmatpush2.msra.mxu0 0.0
      %427 = vmatprep.subr.mxu0 0.0
      %428 = vmatpush2.msra.mxu0 0.0
      %429 = vmatprep.subr.mxu0 0.0
      %430 = vmatpush2.msra.mxu0 0.0
      %431 = vmatprep.mubr.f32.mxu0 0.0
      %432 = vmatmul.mubr.f32.gmra.mxu0 %v320
      %v433 = vpop.f32.mrf.mxu0
      %v434 = vadd.f32 %v241, %v433
      %v435 = vpop.f32.mrf.mxu0
      %436 = vmatprep.mubr.f32.mxu0 0.0
      %437 = vmatmul.mubr.f32.gmra.mxu0 %v323
      %v438 = vpop.f32.mrf.mxu0
      %v439 = vadd.f32 %v246, %v438
      %v440 = vpop.f32.mrf.mxu0
      %441 = vmatprep.mubr.f32.mxu0 0.0
      %442 = vmatmul.mubr.f32.gmra.mxu0 %v326
      %v443 = vpop.f32.mrf.mxu0
      %v444 = vadd.f32 %v251, %v443
      %v445 = vpop.f32.mrf.mxu0
      %446 = vmatprep.mubr.f32.mxu0 0.0
      %447 = vmatmul.mubr.f32.gmra.mxu0 %v329
      %v448 = vpop.f32.mrf.mxu0
      %v449 = vadd.f32 %v256, %v448
      %v450 = vpop.f32.mrf.mxu0
      %451 = vmatprep.mubr.f32.mxu0 0.0
      %452 = vmatmul.mubr.f32.gmra.mxu0 %v332
      %v453 = vpop.f32.mrf.mxu0
      %v454 = vadd.f32 %v261, %v453
      %v455 = vpop.f32.mrf.mxu0
      %456 = vmatprep.mubr.f32.mxu0 0.0
      %457 = vmatmul.mubr.f32.gmra.mxu0 %v335
      %v458 = vpop.f32.mrf.mxu0
      %v459 = vadd.f32 %v266, %v458
      %v460 = vpop.f32.mrf.mxu0
      %461 = vmatprep.mubr.f32.mxu0 0.0
      %462 = vmatmul.mubr.f32.gmra.mxu0 %v338
      %v463 = vpop.f32.mrf.mxu0
      %v464 = vadd.f32 %v271, %v463
      %v465 = vpop.f32.mrf.mxu0
      %466 = vmatprep.mubr.f32.mxu0 0.0
      %467 = vmatmul.mubr.f32.gmra.mxu0 %v341
      %v468 = vpop.f32.mrf.mxu0
      %v469 = vadd.f32 %v276, %v468
      %v470 = vpop.f32.mrf.mxu0
      %471 = vmatprep.mubr.f32.mxu0 0.0
      %472 = vmatmul.mubr.f32.gmra.mxu0 %v344
      %v473 = vpop.f32.mrf.mxu0
      %v474 = vadd.f32 %v281, %v473
      %v475 = vpop.f32.mrf.mxu0
      %476 = vmatprep.mubr.f32.mxu0 0.0
      %477 = vmatmul.mubr.f32.gmra.mxu0 %v347
      %v478 = vpop.f32.mrf.mxu0
      %v479 = vadd.f32 %v286, %v478
      %v480 = vpop.f32.mrf.mxu0
      %481 = vmatprep.mubr.f32.mxu0 0.0
      %482 = vmatmul.mubr.f32.gmra.mxu0 %v350
      %v483 = vpop.f32.mrf.mxu0
      %v484 = vadd.f32 %v291, %v483
      %v485 = vpop.f32.mrf.mxu0
      %486 = vmatprep.mubr.f32.mxu0 0.0
      %487 = vmatmul.mubr.f32.gmra.mxu0 %v353
      %v488 = vpop.f32.mrf.mxu0
      %v489 = vadd.f32 %v296, %v488
      %v490 = vpop.f32.mrf.mxu0
      %491 = vmatprep.mubr.f32.mxu0 0.0
      %492 = vmatmul.mubr.f32.gmra.mxu0 %v356
      %v493 = vpop.f32.mrf.mxu0
      %v494 = vadd.f32 %v301, %v493
      %v495 = vpop.f32.mrf.mxu0
      %496 = vmatprep.mubr.f32.mxu0 0.0
      %497 = vmatmul.mubr.f32.gmra.mxu0 %v359
      %v498 = vpop.f32.mrf.mxu0
      %v499 = vadd.f32 %v306, %v498
      %v500 = vpop.f32.mrf.mxu0
      %501 = vmatprep.mubr.f32.mxu0 0.0
      %502 = vmatmul.mubr.f32.gmra.mxu0 %v362
      %v503 = vpop.f32.mrf.mxu0
      %v504 = vadd.f32 %v311, %v503
      %v505 = vpop.f32.mrf.mxu0
      %506 = vmatprep.mubr.f32.mxu0 0.0
      %507 = vmatmul.mubr.f32.gmra.mxu0 %v365
      %v508 = vpop.f32.mrf.mxu0
      %v509 = vadd.f32 %v316, %v508
      %v510 = vpop.f32.mrf.mxu0
      %511 = vdwg.mxu0
      %vm512 = vcmask 523264
      %513 = vst.msk [vmem:[%s201] sm:$0xff] %vm512, %v434
      %514 = vst.msk [vmem:[%s201 + $0x8] sm:$0xff] %vm512, %v439
      %515 = vst.msk [vmem:[%s201 + $0x10] sm:$0xff] %vm512, %v444
      %516 = vst.msk [vmem:[%s201 + $0x18] sm:$0xff] %vm512, %v449
      %517 = vst.msk [vmem:[%s201 + $0x20] sm:$0xff] %vm512, %v454
      %518 = vst.msk [vmem:[%s201 + $0x28] sm:$0xff] %vm512, %v459
      %519 = vst.msk [vmem:[%s201 + $0x30] sm:$0xff] %vm512, %v464
      %520 = vst.msk [vmem:[%s201 + $0x38] sm:$0xff] %vm512, %v469
      %521 = vst.msk [vmem:[%s201 + $0x40] sm:$0xff] %vm512, %v474
      %522 = vst.msk [vmem:[%s201 + $0x48] sm:$0xff] %vm512, %v479
      %523 = vst.msk [vmem:[%s201 + $0x50] sm:$0xff] %vm512, %v484
      %524 = vst.msk [vmem:[%s201 + $0x58] sm:$0xff] %vm512, %v489
      %525 = vst.msk [vmem:[%s201 + $0x60] sm:$0xff] %vm512, %v494
      %526 = vst.msk [vmem:[%s201 + $0x68] sm:$0xff] %vm512, %v499
      %527 = vst.msk [vmem:[%s201 + $0x70] sm:$0xff] %vm512, %v504
      %528 = vst.msk [vmem:[%s201 + $0x78] sm:$0xff] %vm512, %v509
      %p529 = scmp.lt.s32.totalorder %s18, 1
      %s530 = scalar_select %p529, %s18, 1
      %p531 = scmp.lt.s32.totalorder %s19, 0
      %s532 = scalar_select %p531, %s19, 0
      %s533 = smul.addr %s530, 16
      %s534 = sadd.s32 %s532, %s533
      %s535 = smul.addr %s534, 8
      %s536 = scalar_lea.vmem %s3, %s535
      // Predicated region
      $region33: #{tpu_custom_call.1} parent=31 // pred_check
        %p537 = pneg %p116
      $region34: #{tpu_custom_call.1} parent=31 // pred_check_branch
        %539 = sbr.rel (%p537) target = $region36
      $region35: #{tpu_custom_call.1} parent=31 // pred_region
        _
      $region36: #{tpu_custom_call.1} parent=31 // pred_fallthru
        _
    $region32: #{tpu_custom_call.1} parent=5 // pred_fallthru
      _
    %p540 = scmp.le.s32.totalorder 2, %s9
    // Predicated region
    $region37: #{tpu_custom_call.1} parent=5 // pred_check
      %p541 = pneg %p540
    $region38: #{tpu_custom_call.1} parent=5 // pred_check_branch
      %543 = sbr.rel (%p541) target = $region40
    $region39: #{tpu_custom_call.1} parent=5 // pred_region
      %s544 = ssub.s32 %s9, 2
      // Predicated region
      $region41: #{tpu_custom_call.1} parent=39 // pred_check
        %p545 = pneg %p122
      $region42: #{tpu_custom_call.1} parent=39 // pred_check_branch
        %547 = sbr.rel (%p545) target = $region44
      $region43: #{tpu_custom_call.1} parent=39 // pred_region
        %p548 = scmp.lt.s32.totalorder %s20, 1
        %s549 = scalar_select %p548, %s20, 1
        %p550 = scmp.lt.s32.totalorder %s21, 0
        %s551 = scalar_select %p550, %s21, 0
        %s552 = smul.addr %s549, 16
        %s553 = sadd.s32 %s551, %s552
        %s554 = smul.addr %s553, 8
        %s555 = scalar_lea.vmem %s3, %s554
      $region44: #{tpu_custom_call.1} parent=39 // pred_fallthru
        _
    $region40: #{tpu_custom_call.1} parent=5 // pred_fallthru
      _
  $region6: #{tpu_custom_call.1} parent=0 // loop_footer
    %s13 = sadd.s32 1, %s9
  $region7: #{tpu_custom_call.1} parent=0 // loop_footer_branch
    %8 = sbr.rel target = $region3
  $region8: #{tpu_custom_call.1} parent=0 // loop_exit
    _

</llo_original>
